<compile_context>
chip_gen: v6e
topology: v6e:2x2x1
jax: 0.10.0
libtpu: 0.0.40
codegen_flags: <defaults>
</compile_context>

<pallas_src>
import functools

import jax
import jax.numpy as jnp
from jax import lax
from jax.experimental import pallas as pl
from jax.experimental.pallas import tpu as pltpu

LANE = 128  # vreg lane width; each projection is padded to this many columns.


def fuse_qkv_weights(w_query, w_key, w_value):
    """One-time (init-time) weight fusion.  NOT part of the per-call path.

    - folds the 1/sqrt(d_out) softmax scale into W_query,
    - pads each (d_in, d_out) projection to (d_in, 128) so in-kernel Q/K/V
      slices are lane-aligned views,
    - casts to bf16 for the MXU (accumulation stays f32 inside the kernel).
    Padded weight columns are zeros, so they contribute nothing to Q@K^T and
    produce zero columns in V -> the math is exactly the unpadded math.
    """
    d_in, d_out = w_query.shape
    assert d_out <= LANE, "toy path assumes d_out <= 128"
    scale = 1.0 / (float(d_out) ** 0.5)

    def pad(w):
        return jnp.pad(w, ((0, 0), (0, LANE - d_out)))

    w_q = pad(w_query * scale)   # scale folded at init time (zero runtime cost)
    w_k = pad(w_key)
    w_v = pad(w_value)
    return jnp.concatenate([w_q, w_k, w_v], axis=1).astype(jnp.bfloat16)


def _self_attention_kernel(x_ref, wqkv_ref, o_ref, *, lane):
    x = x_ref[...].astype(jnp.bfloat16)      # (S, d_in)       bf16 MXU operand
    w_qkv = wqkv_ref[...]                    # (d_in, 3*lane)  bf16, pre-fused

    # One MXU pass for all three projections; accumulate in f32.
    qkv = jnp.dot(x, w_qkv, preferred_element_type=jnp.float32)  # (S, 3*lane)

    # Lane-aligned (multiple-of-128) slices: free layout views.
    q = qkv[:, :lane].astype(jnp.bfloat16)              # scale already in Wq
    k = qkv[:, lane:2 * lane].astype(jnp.bfloat16)
    v = qkv[:, 2 * lane:3 * lane].astype(jnp.bfloat16)

    # q @ k.T without materializing a transpose: contract both last dims.
    scores = lax.dot_general(
        q, k, (((1,), (1,)), ((), ())),
        preferred_element_type=jnp.float32)              # (S, S) f32

    # Numerically stable softmax, all in f32; reciprocal -> EUP (approx) slot.
    m = jnp.max(scores, axis=-1, keepdims=True)
    e = jnp.exp(scores - m)
    p = e * pl.reciprocal(jnp.sum(e, axis=-1, keepdims=True), approx=True)

    # Lane-dense store: last dim is 128 (padded columns of v are zeros).
    o_ref[...] = jnp.dot(p.astype(jnp.bfloat16), v,
                         preferred_element_type=jnp.float32).astype(o_ref.dtype)


@functools.partial(jax.jit, static_argnames=("d_out",))
def self_attention_v2(x, w_qkv_fused, *, d_out):
    """x: (S, d_in) f32; w_qkv_fused: (d_in, 3*128) bf16 from fuse_qkv_weights."""
    S, d_in = x.shape
    lane = w_qkv_fused.shape[1] // 3

    cost = pl.CostEstimate(
        flops=2 * S * d_in * (3 * d_out) + 2 * S * S * d_out * 2,
        transcendentals=S * S,                       # exp over the score matrix
        bytes_accessed=(x.size * 4 + w_qkv_fused.size * 2 + S * d_out * 4),
    )

    kernel = functools.partial(_self_attention_kernel, lane=lane)
    out_pad = pl.pallas_call(
        kernel,
        out_shape=jax.ShapeDtypeStruct((S, lane), jnp.float32),
        # Whole-array blocks resident in VMEM (shapes are tiny; no grid).
        in_specs=[pl.BlockSpec(memory_space=pltpu.MemorySpace.VMEM),
                  pl.BlockSpec(memory_space=pltpu.MemorySpace.VMEM)],
        out_specs=pl.BlockSpec(memory_space=pltpu.MemorySpace.VMEM),
        cost_estimate=cost,
    )(x, w_qkv_fused)
    return out_pad[:, :d_out]


def _reference(x, wq, wk, wv):
    q = x @ wq
    k = x @ wk
    v = x @ wv
    s = (q @ k.T) / (k.shape[-1] ** 0.5)
    w = jax.nn.softmax(s, axis=-1)
    return w @ v


if __name__ == "__main__":
    # Same inputs as the PyTorch script: (6, 3).
    x = jnp.array(
        [[0.43, 0.15, 0.89],
         [0.55, 0.87, 0.66],
         [0.57, 0.85, 0.64],
         [0.22, 0.58, 0.33],
         [0.77, 0.25, 0.10],
         [0.05, 0.80, 0.55]], dtype=jnp.float32)

    d_in, d_out = 3, 2

    # Deterministic init (nn.Linear default U(-1/sqrt(d_in), 1/sqrt(d_in))),
    # stored directly in (d_in, d_out) layout (== torch weight transposed).
    key = jax.random.PRNGKey(0)
    kq, kk, kv = jax.random.split(key, 3)
    bound = 1.0 / (d_in ** 0.5)
    w_query = jax.random.uniform(kq, (d_in, d_out), jnp.float32, -bound, bound)
    w_key = jax.random.uniform(kk, (d_in, d_out), jnp.float32, -bound, bound)
    w_value = jax.random.uniform(kv, (d_in, d_out), jnp.float32, -bound, bound)

    # Weight fusion happens ONCE at parameter-init time, outside the call path.
    w_qkv_fused = jax.block_until_ready(fuse_qkv_weights(w_query, w_key, w_value))

    out = jax.block_until_ready(self_attention_v2(x, w_qkv_fused, d_out=d_out))
    ref = _reference(x, w_query, w_key, w_value)

    assert out.shape == (6, 2)
    # bf16 MXU operands (+ approx reciprocal) -> ~1e-2-level relative deviation
    # vs the pure-f32 reference; f32 accumulation + f32 softmax bound the error.
    assert jnp.allclose(out, ref, atol=2e-2, rtol=2e-2), (out, ref)

    print("KERNEL_OK")
</pallas_src>

<mosaic_0001>
module attributes {stable_mosaic.version = 11 : i64} {
  func.func @_self_attention_kernel(%arg0: memref<6x3xf32, #tpu.memory_space<vmem>>, %arg1: memref<3x384xbf16, #tpu.memory_space<vmem>>, %arg2: memref<6x128xf32, #tpu.memory_space<vmem>>) attributes {dimension_semantics = [], scalar_prefetch = 0 : i64, scratch_operands = 0 : i64, tpu.core_type = #tpu.core_type<tc>} {
    %c0 = arith.constant 0 : index
    %c0_0 = arith.constant 0 : index
    %0 = vector.load %arg0[%c0, %c0_0] : memref<6x3xf32, #tpu.memory_space<vmem>>, vector<6x3xf32>
    %1 = arith.truncf %0 : vector<6x3xf32> to vector<6x3xbf16>
    %c0_1 = arith.constant 0 : index
    %c0_2 = arith.constant 0 : index
    %2 = vector.load %arg1[%c0_1, %c0_2] : memref<3x384xbf16, #tpu.memory_space<vmem>>, vector<3x384xbf16>
    %cst = arith.constant dense<0.000000e+00> : vector<6x384xf32>
    %3 = tpu.matmul %1, %2, %cst {dimension_numbers = #tpu.dot_dimension_numbers<[1], [0], [0], [1], [0, 0, 1, 1], [], []>} : vector<6x3xbf16>, vector<3x384xbf16>, vector<6x384xf32> -> vector<6x384xf32>
    %4 = vector.extract_strided_slice %3 {offsets = [0, 0], sizes = [6, 128], strides = [1, 1]} : vector<6x384xf32> to vector<6x128xf32>
    %5 = arith.truncf %4 : vector<6x128xf32> to vector<6x128xbf16>
    %6 = vector.extract_strided_slice %3 {offsets = [0, 128], sizes = [6, 128], strides = [1, 1]} : vector<6x384xf32> to vector<6x128xf32>
    %7 = arith.truncf %6 : vector<6x128xf32> to vector<6x128xbf16>
    %8 = vector.extract_strided_slice %3 {offsets = [0, 256], sizes = [6, 128], strides = [1, 1]} : vector<6x384xf32> to vector<6x128xf32>
    %9 = arith.truncf %8 : vector<6x128xf32> to vector<6x128xbf16>
    %cst_3 = arith.constant dense<0.000000e+00> : vector<6x6xf32>
    %10 = tpu.matmul %5, %7, %cst_3 {dimension_numbers = #tpu.dot_dimension_numbers<[1], [1], [0], [0], [0, 0, 1, 0], [], []>} : vector<6x128xbf16>, vector<6x128xbf16>, vector<6x6xf32> -> vector<6x6xf32>
    %cst_4 = arith.constant dense<0xFF800000> : vector<6xf32>
    %11 = vector.multi_reduction <maximumf>, %10, %cst_4 [1] : vector<6x6xf32> to vector<6xf32>
    %12 = vector.shape_cast %11 : vector<6xf32> to vector<6x1xf32>
    %13 = vector.broadcast %12 : vector<6x1xf32> to vector<6x6xf32>
    %14 = arith.subf %10, %13 : vector<6x6xf32>
    %15 = math.exp %14 : vector<6x6xf32>
    %cst_5 = arith.constant dense<0.000000e+00> : vector<6xf32>
    %16 = vector.multi_reduction <add>, %15, %cst_5 [1] : vector<6x6xf32> to vector<6xf32>
    %17 = vector.shape_cast %16 : vector<6xf32> to vector<6x1xf32>
    %18 = tpu.reciprocal %17 {approx = true} : vector<6x1xf32> -> vector<6x1xf32>
    %19 = vector.broadcast %18 : vector<6x1xf32> to vector<6x6xf32>
    %20 = arith.mulf %15, %19 : vector<6x6xf32>
    %21 = arith.truncf %20 : vector<6x6xf32> to vector<6x6xbf16>
    %cst_6 = arith.constant dense<0.000000e+00> : vector<6x128xf32>
    %22 = tpu.matmul %21, %9, %cst_6 {dimension_numbers = #tpu.dot_dimension_numbers<[1], [0], [0], [1], [0, 0, 1, 1], [], []>} : vector<6x6xbf16>, vector<6x128xbf16>, vector<6x128xf32> -> vector<6x128xf32>
    %c0_7 = arith.constant 0 : index
    %c0_8 = arith.constant 0 : index
    %23 = vector.load %arg2[%c0_7, %c0_8] : memref<6x128xf32, #tpu.memory_space<vmem>>, vector<6x128xf32>
    tpu.vector_store %arg2[%c0_7, %c0_8], %22 {strides = array<i32>} : memref<6x128xf32, #tpu.memory_space<vmem>>, vector<6x128xf32>,
    return
  }
}

</mosaic_0001>

<llo_original>
// kernel: self_attention_v2.1
$region0: #{self_attention_v2.1}
  #allocation0 [shape = 'u32[]', space=smem, size = 0x4, offset = 0x4, fixed_abs, tag = 'smem constant byte address 0x4 - core index']
  #allocation1 [shape = 'u32[144,128]{1,0:T(1,128)}', space=vmem, size = 0x12000, scoped, tag = 'internal scratch']
  %s0 = inlined_call_operand.vmem [shape: f32[6,3], index: 0, kind: input, shape index: {}]
  %s1 = inlined_call_operand.vmem [shape: bf16[3,384], index: 1, kind: input, shape index: {}]
  %s2 = inlined_call_operand.vmem [shape: f32[6,128], index: 2, kind: output, shape index: {}]
  %s3 = sld [smem:[#allocation0]]
  $region18: #{self_attention_v2.1} parent=0
    _
  %s5 = ssub.s32 1, %s3
  %s6 = scalar_select 0, %s5, %s3
  // Predicated region
  $region2: #{self_attention_v2.1} parent=0 // pred_check
    _
  $region3: #{self_attention_v2.1} parent=0 // pred_check_branch
    %8 = sbr.rel (0) target = $region5
  $region4: #{self_attention_v2.1} parent=0 // pred_region
    _
  $region5: #{self_attention_v2.1} parent=0 // pred_fallthru
    _
  // Predicated region
  $region6: #{self_attention_v2.1} parent=0 // pred_check
    _
  $region7: #{self_attention_v2.1} parent=0 // pred_check_branch
    %10 = sbr.rel (0) target = $region9
  $region8: #{self_attention_v2.1} parent=0 // pred_region
    _
  $region9: #{self_attention_v2.1} parent=0 // pred_fallthru
    _
  %v12 = vld [vmem:[%s0] sm:$0x3f]
  %v13 = vpack.c.bf16 %v12, %v12
  %v14 = vld [vmem:[%s1] sm:$0x3f]
  %v16 = vcombine.high %v14, %v14
  %v18 = vunpack.c.l.s4 1983009808
  %v19 = vunpack.c.0.s8 %v18
  %v20 = vlaneseq
  %v21 = vshrl.u32 %v20, 7
  %v22 = vsub.s32 %v19, %v21
  %v23 = vrot.slane %v14, %v22
  %v25 = vunpack.c.l.s4 1983009808
  %v26 = vunpack.c.0.s8 %v25
  %v27 = vlaneseq
  %v28 = vshrl.u32 %v27, 7
  %v29 = vsub.s32 %v26, %v28
  %v30 = vrot.slane %v16, %v29
  %v31 = vcombine.high %v23, %v23
  %vm32 = vcmask 23552
  %v34 = vsel %vm32, %v13, 0
  %vm36 = vcmask 1040384
  %vm37 = vcmask 1041408
  %v38 = vsel %vm36, 4294967295, 65535
  %v39 = vsel %vm37, %v38, 0
  %v41 = vand.u32 %v23, %v39
  %v44 = vand.u32 %v31, %v39
  %v47 = vand.u32 %v30, %v39
  %49 = vmatprep.subr.bf16.mxu0 0
  %50 = vmatpush1.bf16.msra.mxu0 0
  %51 = vmatprep.subr.bf16.mxu0 0
  %52 = vmatpush1.bf16.msra.mxu0 0
  %53 = vmatprep.subr.bf16.mxu0 0
  %54 = vmatpush1.bf16.msra.mxu0 0
  %55 = vmatprep.subr.bf16.mxu0 0
  %56 = vmatpush1.bf16.msra.mxu0 0
  %57 = vmatprep.subr.bf16.mxu0 0
  %58 = vmatpush1.bf16.msra.mxu0 0
  %59 = vmatprep.subr.bf16.mxu0 0
  %60 = vmatpush1.bf16.msra.mxu0 0
  %61 = vmatprep.subr.bf16.mxu0 0
  %62 = vmatpush1.bf16.msra.mxu0 0
  %63 = vmatprep.subr.bf16.mxu0 %v44
  %64 = vmatpush1.bf16.msra.mxu0 %v41
  %65 = vmatprep.subr.bf16.mxu0 0
  %66 = vmatpush2.bf16.msra.mxu0 0
  %67 = vmatprep.subr.bf16.mxu0 0
  %68 = vmatpush2.bf16.msra.mxu0 0
  %69 = vmatprep.subr.bf16.mxu0 0
  %70 = vmatpush2.bf16.msra.mxu0 0
  %71 = vmatprep.subr.bf16.mxu0 0
  %72 = vmatpush2.bf16.msra.mxu0 0
  %73 = vmatprep.subr.bf16.mxu0 0
  %74 = vmatpush2.bf16.msra.mxu0 0
  %75 = vmatprep.subr.bf16.mxu0 0
  %76 = vmatpush2.bf16.msra.mxu0 0
  %77 = vmatprep.subr.bf16.mxu0 0
  %78 = vmatpush2.bf16.msra.mxu0 0
  %79 = vmatprep.subr.bf16.mxu0 0
  %80 = vmatpush2.bf16.msra.mxu0 0
  %81 = vmatprep.mubr.bf16.mxu0 0
  %82 = vmatmul.mubr.bf16.gmra.mxu0 %v34
  %v83 = vpop.f32.mrf.mxu0
  %v84 = vadd.f32 0.0, %v83
  %v85 = vpop.f32.mrf.mxu0
  %v86 = vadd.f32 0.0, %v85
  %v87 = vpop.f32.mrf.mxu0
  %v88 = vpop.f32.mrf.mxu0
  %89 = vdwg.mxu0
  %90 = vmatprep.subr.bf16.mxu0 0
  %91 = vmatpush1.bf16.msra.mxu0 0
  %92 = vmatprep.subr.bf16.mxu0 0
  %93 = vmatpush1.bf16.msra.mxu0 0
  %94 = vmatprep.subr.bf16.mxu0 0
  %95 = vmatpush1.bf16.msra.mxu0 0
  %96 = vmatprep.subr.bf16.mxu0 0
  %97 = vmatpush1.bf16.msra.mxu0 0
  %98 = vmatprep.subr.bf16.mxu0 0
  %99 = vmatpush1.bf16.msra.mxu0 0
  %100 = vmatprep.subr.bf16.mxu0 0
  %101 = vmatpush1.bf16.msra.mxu0 0
  %102 = vmatprep.subr.bf16.mxu0 0
  %103 = vmatpush1.bf16.msra.mxu0 0
  %104 = vmatprep.subr.bf16.mxu0 0
  %105 = vmatpush1.bf16.msra.mxu0 %v47
  %106 = vmatprep.subr.bf16.mxu0 0
  %107 = vmatpush2.bf16.msra.mxu0 0
  %108 = vmatprep.subr.bf16.mxu0 0
  %109 = vmatpush2.bf16.msra.mxu0 0
  %110 = vmatprep.subr.bf16.mxu0 0
  %111 = vmatpush2.bf16.msra.mxu0 0
  %112 = vmatprep.subr.bf16.mxu0 0
  %113 = vmatpush2.bf16.msra.mxu0 0
  %114 = vmatprep.subr.bf16.mxu0 0
  %115 = vmatpush2.bf16.msra.mxu0 0
  %116 = vmatprep.subr.bf16.mxu0 0
  %117 = vmatpush2.bf16.msra.mxu0 0
  %118 = vmatprep.subr.bf16.mxu0 0
  %119 = vmatpush2.bf16.msra.mxu0 0
  %120 = vmatprep.subr.bf16.mxu0 0
  %121 = vmatpush2.bf16.msra.mxu0 0
  %122 = vmatprep.mubr.bf16.mxu0 0
  %123 = vmatmul.mubr.bf16.gmra.mxu0 %v34
  %v124 = vpop.f32.mrf.mxu0
  %v125 = vadd.f32 0.0, %v124
  %v126 = vpop.f32.mrf.mxu0
  %v127 = vpop.f32.mrf.mxu0
  %v128 = vpop.f32.mrf.mxu0
  %129 = vdwg.mxu0
  %v130 = vpack.c.bf16 %v84, %v84
  %v131 = vpack.c.bf16 %v86, %v86
  %v132 = vpack.c.bf16 %v125, %v125
  %133 = vmatprep.subr.bf16.mxu0 0
  %134 = vmatpush1.bf16.xpose.msra.mxu0 0
  %135 = vmatprep.subr.bf16.mxu0 0
  %136 = vmatpush1.bf16.xpose.msra.mxu0 0
  %137 = vmatprep.subr.bf16.mxu0 0
  %138 = vmatpush1.bf16.xpose.msra.mxu0 0
  %139 = vmatprep.subr.bf16.mxu0 0
  %140 = vmatpush1.bf16.xpose.msra.mxu0 0
  %141 = vmatprep.subr.bf16.mxu0 0
  %142 = vmatpush1.bf16.xpose.msra.mxu0 0
  %143 = vmatprep.subr.bf16.mxu0 0
  %144 = vmatpush1.bf16.xpose.msra.mxu0 0
  %145 = vmatprep.subr.bf16.mxu0 0
  %146 = vmatpush1.bf16.xpose.msra.mxu0 0
  %147 = vmatprep.subr.bf16.mxu0 0
  %148 = vmatpush1.bf16.xpose.msra.mxu0 %v131
  %149 = vmatprep.subr.bf16.mxu0 0
  %150 = vmatpush2.bf16.xpose.msra.mxu0 0
  %151 = vmatprep.subr.bf16.mxu0 0
  %152 = vmatpush2.bf16.xpose.msra.mxu0 0
  %153 = vmatprep.subr.bf16.mxu0 0
  %154 = vmatpush2.bf16.xpose.msra.mxu0 0
  %155 = vmatprep.subr.bf16.mxu0 0
  %156 = vmatpush2.bf16.xpose.msra.mxu0 0
  %157 = vmatprep.subr.bf16.mxu0 0
  %158 = vmatpush2.bf16.xpose.msra.mxu0 0
  %159 = vmatprep.subr.bf16.mxu0 0
  %160 = vmatpush2.bf16.xpose.msra.mxu0 0
  %161 = vmatprep.subr.bf16.mxu0 0
  %162 = vmatpush2.bf16.xpose.msra.mxu0 0
  %163 = vmatprep.subr.bf16.mxu0 0
  %164 = vmatpush2.bf16.xpose.msra.mxu0 0
  %165 = vmatprep.mubr.bf16.mxu0 0
  %166 = vmatmul.mubr.bf16.gmra.mxu0 %v130
  %v167 = vpop.f32.mrf.mxu0
  %v168 = vadd.f32 0.0, %v167
  %v169 = vpop.f32.mrf.mxu0
  %v170 = vpop.f32.mrf.mxu0
  %v171 = vpop.f32.mrf.mxu0
  %172 = vdwg.mxu0
  %vm173 = vcmask 46080
  %v174 = vsel %vm173, %v168, -inf
  %175 = vmax.xlane.f32.xlu0 %v174
  %v176 = vpop.xlane.xlu0 %175
  %v177 = vsub.f32 %v168, %v176
  %v178 = vmul.f32 %v177, 1.442695
  %v179 = vpow.pop %v178
  %v180 = vsel %vm173, %v179, 0.0
  %181 = vadd.xlane.f32.xlu0 %v180
  %v182 = vpop.xlane.xlu0 %181
  %v183 = vrcp.pop %v182
  %v184 = vmul.f32 %v179, %v183
  %v185 = vpack.c.bf16 %v184, %v184
  %vm186 = vcmask 48128
  %v188 = vsel %vm186, %v185, 0
  %vm190 = vcmask 1042432
  %v192 = vsel %vm190, %v132, 0
  %194 = vmatprep.subr.bf16.mxu0 0
  %195 = vmatpush1.bf16.msra.mxu0 0
  %196 = vmatprep.subr.bf16.mxu0 0
  %197 = vmatpush1.bf16.msra.mxu0 0
  %198 = vmatprep.subr.bf16.mxu0 0
  %199 = vmatpush1.bf16.msra.mxu0 0
  %200 = vmatprep.subr.bf16.mxu0 0
  %201 = vmatpush1.bf16.msra.mxu0 0
  %202 = vmatprep.subr.bf16.mxu0 0
  %203 = vmatpush1.bf16.msra.mxu0 0
  %204 = vmatprep.subr.bf16.mxu0 0
  %205 = vmatpush1.bf16.msra.mxu0 0
  %206 = vmatprep.subr.bf16.mxu0 0
  %207 = vmatpush1.bf16.msra.mxu0 0
  %208 = vmatprep.subr.bf16.mxu0 0
  %209 = vmatpush1.bf16.msra.mxu0 %v192
  %210 = vmatprep.subr.bf16.mxu0 0
  %211 = vmatpush2.bf16.msra.mxu0 0
  %212 = vmatprep.subr.bf16.mxu0 0
  %213 = vmatpush2.bf16.msra.mxu0 0
  %214 = vmatprep.subr.bf16.mxu0 0
  %215 = vmatpush2.bf16.msra.mxu0 0
  %216 = vmatprep.subr.bf16.mxu0 0
  %217 = vmatpush2.bf16.msra.mxu0 0
  %218 = vmatprep.subr.bf16.mxu0 0
  %219 = vmatpush2.bf16.msra.mxu0 0
  %220 = vmatprep.subr.bf16.mxu0 0
  %221 = vmatpush2.bf16.msra.mxu0 0
  %222 = vmatprep.subr.bf16.mxu0 0
  %223 = vmatpush2.bf16.msra.mxu0 0
  %224 = vmatprep.subr.bf16.mxu0 0
  %225 = vmatpush2.bf16.msra.mxu0 0
  %226 = vmatprep.mubr.bf16.mxu0 0
  %227 = vmatmul.mubr.bf16.gmra.mxu0 %v188
  %v228 = vpop.f32.mrf.mxu0
  %v229 = vadd.f32 0.0, %v228
  %v230 = vpop.f32.mrf.mxu0
  %v231 = vpop.f32.mrf.mxu0
  %v232 = vpop.f32.mrf.mxu0
  %233 = vdwg.mxu0
  %234 = vst [vmem:[%s2] sm:$0x3f] %v229
  // Predicated region
  $region10: #{self_attention_v2.1} parent=0 // pred_check
    _
  $region11: #{self_attention_v2.1} parent=0 // pred_check_branch
    %236 = sbr.rel (0) target = $region13
  $region12: #{self_attention_v2.1} parent=0 // pred_region
    _
  $region13: #{self_attention_v2.1} parent=0 // pred_fallthru
    _
  // Predicated region
  $region14: #{self_attention_v2.1} parent=0 // pred_check
    _
  $region15: #{self_attention_v2.1} parent=0 // pred_check_branch
    %238 = sbr.rel (0) target = $region17
  $region16: #{self_attention_v2.1} parent=0 // pred_region
    _
  $region17: #{self_attention_v2.1} parent=0 // pred_fallthru
    _

</llo_original>
